<compile_context>
chip_gen: v6e
topology: v6e:2x2x1
jax: 0.10.0
libtpu: 0.0.40
codegen_flags: <defaults>
</compile_context>

<pallas_src>
import functools

import numpy as np
import jax
import jax.numpy as jnp
from jax.experimental import pallas as pl
from jax.experimental.pallas import tpu as pltpu


# ----------------------------- helpers ---------------------------------------
def _round_up(v, m):
    return (v + m - 1) // m * m


def _pick_tiles(M, N, K):
    """Largest convenient tiles that still satisfy the (8,128) layout rules."""
    tm = min(128, _round_up(M, 8))     # sublane dim of x / out
    tn = min(256, _round_up(N, 128))   # lane dim of w / out  (lane-dense)
    tk = min(512, _round_up(K, 128))   # lane dim of x, sublane dim of w
    return tm, tn, tk


# ----------------------------- Pallas kernel ---------------------------------
def _fused_linear_kernel(x_ref, w_ref, scale_ref, shift_ref, o_ref, acc_ref,
                         *, apply_relu):
    """Computes one (tm, tn) tile of  act( (x @ w) * scale + shift ).

    Grid axes: (i over M tiles, j over N tiles, k over K tiles); the output
    tile stays resident in the f32 VMEM accumulator across the k axis.
    scale/shift are (1, tn) row vectors (Linear bias + BatchNorm folded in).
    """
    @pl.when(pl.program_id(2) == 0)
    def _init():
        acc_ref[...] = jnp.zeros_like(acc_ref)

    acc_ref[...] += jnp.dot(x_ref[...], w_ref[...],
                            preferred_element_type=jnp.float32)

    @pl.when(pl.program_id(2) == pl.num_programs(2) - 1)
    def _epilogue():
        y = acc_ref[...] * scale_ref[...] + shift_ref[...]
        if apply_relu:
            y = jnp.maximum(y, 0.0)
        o_ref[...] = y.astype(o_ref.dtype)


def fused_linear(x, w, scale, shift, *, apply_relu=False, out_dtype=None):
    """y = act((x @ w) * scale + shift)  with x:(M,K), w:(K,N), scale/shift:(N,)."""
    M, K = x.shape
    Kw, N = w.shape
    assert K == Kw, (K, Kw)
    out_dtype = out_dtype or x.dtype

    tm, tn, tk = _pick_tiles(M, N, K)
    Mp, Np, Kp = _round_up(M, tm), _round_up(N, tn), _round_up(K, tk)

    # zero-pad to tile multiples (zeros don't change the matmul; padded output
    # columns get scale=shift=0 and are sliced off below)
    if (Mp, Kp) != (M, K):
        x = jnp.pad(x, ((0, Mp - M), (0, Kp - K)))
    if (Kp, Np) != (K, N):
        w = jnp.pad(w, ((0, Kp - K), (0, Np - N)))
    if Np != N:
        scale = jnp.pad(scale, (0, Np - N))
        shift = jnp.pad(shift, (0, Np - N))
    scale2 = scale.reshape(1, Np).astype(jnp.float32)
    shift2 = shift.reshape(1, Np).astype(jnp.float32)

    grid = (Mp // tm, Np // tn, Kp // tk)
    kernel = functools.partial(_fused_linear_kernel, apply_relu=apply_relu)

    out = pl.pallas_call(
        kernel,
        out_shape=jax.ShapeDtypeStruct((Mp, Np), out_dtype),
        grid_spec=pltpu.PrefetchScalarGridSpec(
            num_scalar_prefetch=0,
            grid=grid,
            in_specs=[
                pl.BlockSpec((tm, tk), lambda i, j, k: (i, k)),   # x tile
                pl.BlockSpec((tk, tn), lambda i, j, k: (k, j)),   # w tile
                pl.BlockSpec((1, tn), lambda i, j, k: (0, j)),    # scale row
                pl.BlockSpec((1, tn), lambda i, j, k: (0, j)),    # shift row
            ],
            out_specs=pl.BlockSpec((tm, tn), lambda i, j, k: (i, j)),
            scratch_shapes=[pltpu.VMEM((tm, tn), jnp.float32)],
        ),
        compiler_params=pltpu.CompilerParams(
            dimension_semantics=("parallel", "parallel", "arbitrary"),
        ),
    )(x, w, scale2, shift2)

    return out[:M, :N]


# ----------------------------- Module wrapper ---------------------------------
class MLPPallas:
    """Pallas equivalent of the PyTorch MLP (inference / eval mode)."""

    def __init__(self, input_dim, hidden_dim, output_dim, num_hidden_layers=1,
                 *, key, dtype=jnp.float32):
        self.eps = 1e-5  # nn.BatchNorm1d default
        self.dtype = dtype
        self.hidden_layers = []  # list of (W, b, gamma, beta, run_mean, run_var)

        dims_in = [input_dim] + [hidden_dim] * (num_hidden_layers - 1)
        keys = jax.random.split(key, 6 * num_hidden_layers + 2)
        ki = 0
        for d_in in dims_in:
            bound = 1.0 / np.sqrt(d_in)
            W = jax.random.uniform(keys[ki], (d_in, hidden_dim), dtype,
                                   -bound, bound); ki += 1
            b = jax.random.uniform(keys[ki], (hidden_dim,), dtype,
                                   -bound, bound); ki += 1
            gamma = 1.0 + 0.1 * jax.random.normal(keys[ki], (hidden_dim,), dtype); ki += 1
            beta = 0.1 * jax.random.normal(keys[ki], (hidden_dim,), dtype); ki += 1
            run_mean = 0.1 * jax.random.normal(keys[ki], (hidden_dim,), dtype); ki += 1
            run_var = jax.random.uniform(keys[ki], (hidden_dim,), dtype, 0.5, 1.5); ki += 1
            self.hidden_layers.append((W, b, gamma, beta, run_mean, run_var))

        bound = 1.0 / np.sqrt(hidden_dim)
        W_out = jax.random.uniform(keys[ki], (hidden_dim, output_dim), dtype,
                                   -bound, bound); ki += 1
        b_out = jax.random.uniform(keys[ki], (output_dim,), dtype,
                                   -bound, bound); ki += 1
        self.out_layer = (W_out, b_out)

    def __call__(self, x):
        h = x
        for (W, b, gamma, beta, mean, var) in self.hidden_layers:
            # fold Linear bias + eval-mode BatchNorm into one (scale, shift)
            s = gamma * jax.lax.rsqrt(var + self.eps)
            scale = s
            shift = (b - mean) * s + beta
            h = fused_linear(h, W, scale, shift, apply_relu=True)
        W, b = self.out_layer
        return fused_linear(h, W, jnp.ones_like(b), b, apply_relu=False)


# ----------------------------- Reference (pure jnp) ---------------------------
def _mlp_ref(x, hidden_layers, out_layer, eps):
    h = x
    for (W, b, gamma, beta, mean, var) in hidden_layers:
        z = h @ W + b
        z = (z - mean) / jnp.sqrt(var + eps) * gamma + beta
        h = jnp.maximum(z, 0.0)
    W, b = out_layer
    return h @ W + b


# ----------------------------- Test -------------------------------------------
if __name__ == "__main__":
    key = jax.random.PRNGKey(0)
    k_param, k_x = jax.random.split(key)

    batch, input_dim, hidden_dim, output_dim = 8, 32, 64, 16
    num_hidden_layers = 2

    model = MLPPallas(input_dim, hidden_dim, output_dim,
                      num_hidden_layers=num_hidden_layers, key=k_param)
    x = jax.random.normal(k_x, (batch, input_dim), dtype=jnp.float32)

    out = model(x)
    out = jax.block_until_ready(out)

    ref = _mlp_ref(x, model.hidden_layers, model.out_layer, model.eps)

    assert out.shape == (batch, output_dim), out.shape
    np.testing.assert_allclose(np.asarray(out), np.asarray(ref),
                               rtol=1e-3, atol=1e-3)
    print("KERNEL_OK")
</pallas_src>

<mosaic_0001>
module attributes {stable_mosaic.version = 11 : i64} {
  func.func @_fused_linear_kernel(%arg0: i32, %arg1: i32, %arg2: i32, %arg3: memref<8x128xf32, #tpu.memory_space<vmem>>, %arg4: memref<128x128xf32, #tpu.memory_space<vmem>>, %arg5: memref<1x128xf32, #tpu.memory_space<vmem>>, %arg6: memref<1x128xf32, #tpu.memory_space<vmem>>, %arg7: memref<8x128xf32, #tpu.memory_space<vmem>>, %arg8: memref<8x128xf32, #tpu.memory_space<vmem>>) attributes {dimension_semantics = [#tpu.dimension_semantics<parallel>, #tpu.dimension_semantics<parallel>, #tpu.dimension_semantics<arbitrary>], iteration_bounds = array<i64: 1, 1, 1>, scalar_prefetch = 0 : i64, scratch_operands = 1 : i64, tpu.core_type = #tpu.core_type<tc>, window_params = [{transform_indices = @transform_0, window_bounds = array<i64: 8, 128>}, {transform_indices = @transform_1, window_bounds = array<i64: 128, 128>}, {transform_indices = @transform_2, window_bounds = array<i64: 1, 128>}, {transform_indices = @transform_3, window_bounds = array<i64: 1, 128>}, {transform_indices = @transform_4, window_bounds = array<i64: 8, 128>}]} {
    %c0_i32 = arith.constant 0 : i32
    %0 = arith.cmpi eq, %arg2, %c0_i32 : i32
    %1 = arith.extui %0 : i1 to i32
    %c0_i32_0 = arith.constant 0 : i32
    %2 = arith.cmpi ne, %1, %c0_i32_0 : i32
    scf.if %2 {
      %cst_10 = arith.constant 0.000000e+00 : f32
      %12 = vector.broadcast %cst_10 : f32 to vector<8x128xf32>
      %c0_11 = arith.constant 0 : index
      %c0_12 = arith.constant 0 : index
      %13 = vector.load %arg8[%c0_11, %c0_12] : memref<8x128xf32, #tpu.memory_space<vmem>>, vector<8x128xf32>
      tpu.vector_store %arg8[%c0_11, %c0_12], %12 {strides = array<i32>} : memref<8x128xf32, #tpu.memory_space<vmem>>, vector<8x128xf32>,
    } else {
    }
    %c0 = arith.constant 0 : index
    %c0_1 = arith.constant 0 : index
    %3 = vector.load %arg8[%c0, %c0_1] : memref<8x128xf32, #tpu.memory_space<vmem>>, vector<8x128xf32>
    %c0_2 = arith.constant 0 : index
    %c0_3 = arith.constant 0 : index
    %4 = vector.load %arg3[%c0_2, %c0_3] : memref<8x128xf32, #tpu.memory_space<vmem>>, vector<8x128xf32>
    %c0_4 = arith.constant 0 : index
    %c0_5 = arith.constant 0 : index
    %5 = vector.load %arg4[%c0_4, %c0_5] : memref<128x128xf32, #tpu.memory_space<vmem>>, vector<128x128xf32>
    %cst = arith.constant dense<0.000000e+00> : vector<8x128xf32>
    %6 = tpu.matmul %4, %5, %cst {dimension_numbers = #tpu.dot_dimension_numbers<[1], [0], [0], [1], [0, 0, 1, 1], [], []>} : vector<8x128xf32>, vector<128x128xf32>, vector<8x128xf32> -> vector<8x128xf32>
    %7 = arith.addf %3, %6 : vector<8x128xf32>
    %c0_6 = arith.constant 0 : index
    %c0_7 = arith.constant 0 : index
    %8 = vector.load %arg8[%c0_6, %c0_7] : memref<8x128xf32, #tpu.memory_space<vmem>>, vector<8x128xf32>
    tpu.vector_store %arg8[%c0_6, %c0_7], %7 {strides = array<i32>} : memref<8x128xf32, #tpu.memory_space<vmem>>, vector<8x128xf32>,
    %c0_i32_8 = arith.constant 0 : i32
    %9 = arith.cmpi eq, %arg2, %c0_i32_8 : i32
    %10 = arith.extui %9 : i1 to i32
    %c0_i32_9 = arith.constant 0 : i32
    %11 = arith.cmpi ne, %10, %c0_i32_9 : i32
    scf.if %11 {
      %c0_10 = arith.constant 0 : index
      %c0_11 = arith.constant 0 : index
      %12 = vector.load %arg8[%c0_10, %c0_11] : memref<8x128xf32, #tpu.memory_space<vmem>>, vector<8x128xf32>
      %c0_12 = arith.constant 0 : index
      %c0_13 = arith.constant 0 : index
      %13 = vector.load %arg5[%c0_12, %c0_13] : memref<1x128xf32, #tpu.memory_space<vmem>>, vector<1x128xf32>
      %14 = vector.broadcast %13 : vector<1x128xf32> to vector<8x128xf32>
      %15 = arith.mulf %12, %14 : vector<8x128xf32>
      %c0_14 = arith.constant 0 : index
      %c0_15 = arith.constant 0 : index
      %16 = vector.load %arg6[%c0_14, %c0_15] : memref<1x128xf32, #tpu.memory_space<vmem>>, vector<1x128xf32>
      %17 = vector.broadcast %16 : vector<1x128xf32> to vector<8x128xf32>
      %18 = arith.addf %15, %17 : vector<8x128xf32>
      %cst_16 = arith.constant 0.000000e+00 : f32
      %19 = vector.broadcast %cst_16 : f32 to vector<8x128xf32>
      %20 = arith.maximumf %18, %19 : vector<8x128xf32>
      %c0_17 = arith.constant 0 : index
      %c0_18 = arith.constant 0 : index
      %21 = vector.load %arg7[%c0_17, %c0_18] : memref<8x128xf32, #tpu.memory_space<vmem>>, vector<8x128xf32>
      tpu.vector_store %arg7[%c0_17, %c0_18], %20 {strides = array<i32>} : memref<8x128xf32, #tpu.memory_space<vmem>>, vector<8x128xf32>,
    } else {
    }
    return
  }
  func.func @transform_0(%arg0: i32, %arg1: i32, %arg2: i32) -> (i32, i32) {
    %c0_i32 = arith.constant 0 : i32
    return %arg0, %arg2 : i32, i32
  }
  func.func @transform_1(%arg0: i32, %arg1: i32, %arg2: i32) -> (i32, i32) {
    %c0_i32 = arith.constant 0 : i32
    return %arg2, %arg1 : i32, i32
  }
  func.func @transform_2(%arg0: i32, %arg1: i32, %arg2: i32) -> (i32, i32) {
    %c0_i32 = arith.constant 0 : i32
    %c0_i32_0 = arith.constant 0 : i32
    return %c0_i32, %arg1 : i32, i32
  }
  func.func @transform_3(%arg0: i32, %arg1: i32, %arg2: i32) -> (i32, i32) {
    %c0_i32 = arith.constant 0 : i32
    %c0_i32_0 = arith.constant 0 : i32
    return %c0_i32, %arg1 : i32, i32
  }
  func.func @transform_4(%arg0: i32, %arg1: i32, %arg2: i32) -> (i32, i32) {
    %c0_i32 = arith.constant 0 : i32
    return %arg0, %arg1 : i32, i32
  }
}

</mosaic_0001>

<llo_original>
// kernel: tpu_custom_call.1
$region0: #{tpu_custom_call.1}
  #allocation0 [shape = 'u32[]', space=smem, size = 0x4, offset = 0x4, fixed_abs, tag = 'smem constant byte address 0x4 - core index']
  #allocation1 [shape = 'u32[144,128]{1,0:T(1,128)}', space=vmem, size = 0x12000, scoped, tag = 'internal scratch']
  #allocation2 [shape = 'f32[8,128]{1,0:T(8,128)}', space=vmem, size = 0x1000, scoped, tag = 'scratch operand']
  %s0 = inlined_call_operand.hbm [shape: f32[8,128], index: 0, kind: input, shape index: {}]
  %s1 = inlined_call_operand.hbm [shape: f32[128,128], index: 1, kind: input, shape index: {}]
  %s2 = inlined_call_operand.vmem [shape: f32[1,128], index: 2, kind: input, shape index: {}]
  %s3 = inlined_call_operand.vmem [shape: f32[1,128], index: 3, kind: input, shape index: {}]
  %s4 = inlined_call_operand.hbm [shape: f32[8,128], index: 4, kind: output, shape index: {}]
  %s5 = sld [smem:[#allocation0]]
  $region42: #{tpu_custom_call.1} parent=0
    _
  %s7 = ssub.s32 1, %s5
  %s8 = scalar_select 0, %s7, %s5
  $region1: #{tpu_custom_call.1} parent=0
    #allocation3 [shape = 'u8[4096]{0}', space=vmem, size = 0x1000, scoped, tag = 'input window, operand 0, single buffered']
    #allocation4 [shape = 's32[1]{0}', space=sflag, size = 0x4, scoped, tag = 'scoped memory for tpu_custom_call.1']
    #allocation5 [shape = 's32[1]{0}', space=sflag, size = 0x4, scoped, tag = 'scoped memory for tpu_custom_call.1']
    #allocation6 [shape = 'u8[65536]{0}', space=vmem, size = 0x10000, scoped, tag = 'input window, operand 1, single buffered']
    #allocation7 [shape = 's32[1]{0}', space=sflag, size = 0x4, scoped, tag = 'scoped memory for tpu_custom_call.1']
    #allocation8 [shape = 'u8[4096]{0}', space=vmem, size = 0x1000, scoped, tag = 'output window, operand 0, single buffered']
    %9 = vsyncpa [#allocation4], 0
    %10 = vsyncpa [#allocation7], 0
    %11 = vsyncpa [#allocation5], 0
    // Predicated region
    $region2: #{tpu_custom_call.1} parent=1 // pred_check
      _
    $region3: #{tpu_custom_call.1} parent=1 // pred_check_branch
      %13 = sbr.rel (0) target = $region5
    $region4: #{tpu_custom_call.1} parent=1 // pred_region
      %s15 = ssub.s32 128, 128
      %16 = vsyncadd [#allocation4], %s15
      %s18 = sshll.u32 [#allocation3], 4
      %s19 = int_to_ptr.vmem [resolvable:$true] %s18
      %21 = dma.hbm_to_vmem [thread:$0]  %s0, 128, %s19, [#allocation4]
    $region5: #{tpu_custom_call.1} parent=1 // pred_fallthru
      _
    // Predicated region
    $region6: #{tpu_custom_call.1} parent=1 // pred_check
      _
    $region7: #{tpu_custom_call.1} parent=1 // pred_check_branch
      %23 = sbr.rel (0) target = $region9
    $region8: #{tpu_custom_call.1} parent=1 // pred_region
      %s25 = ssub.s32 2048, 2048
      %26 = vsyncadd [#allocation7], %s25
      %s27 = sshll.u32 [#allocation6], 4
      %s28 = int_to_ptr.vmem [resolvable:$true] %s27
      %33 = dma.hbm_to_vmem [thread:$0]  %s1, 2048, %s28, [#allocation7], 128, 128, 8
    $region9: #{tpu_custom_call.1} parent=1 // pred_fallthru
      _
    // Predicated region
    $region10: #{tpu_custom_call.1} parent=1 // pred_check
      _
    $region11: #{tpu_custom_call.1} parent=1 // pred_check_branch
      %35 = sbr.rel (0) target = $region13
    $region12: #{tpu_custom_call.1} parent=1 // pred_region
      _
    $region13: #{tpu_custom_call.1} parent=1 // pred_fallthru
      _
    // Predicated region
    $region14: #{tpu_custom_call.1} parent=1 // pred_check
      _
    $region15: #{tpu_custom_call.1} parent=1 // pred_check_branch
      %37 = sbr.rel (0) target = $region17
    $region16: #{tpu_custom_call.1} parent=1 // pred_region
      _
    $region17: #{tpu_custom_call.1} parent=1 // pred_fallthru
      _
    // Predicated region
    $region18: #{tpu_custom_call.1} parent=1 // pred_check
      _
    $region19: #{tpu_custom_call.1} parent=1 // pred_check_branch
      %39 = sbr.rel (0) target = $region21
    $region20: #{tpu_custom_call.1} parent=1 // pred_region
      %40 = dma.done [#allocation4], 128
    $region21: #{tpu_custom_call.1} parent=1 // pred_fallthru
      _
    // Predicated region
    $region22: #{tpu_custom_call.1} parent=1 // pred_check
      _
    $region23: #{tpu_custom_call.1} parent=1 // pred_check_branch
      %42 = sbr.rel (0) target = $region25
    $region24: #{tpu_custom_call.1} parent=1 // pred_region
      %43 = dma.done [#allocation7], 2048
    $region25: #{tpu_custom_call.1} parent=1 // pred_fallthru
      _
    %p44 = scmp.eq.s32.totalorder 0, 0
    // Predicated region
    $region26: #{tpu_custom_call.1} parent=1 // pred_check
      %p45 = pneg %p44
    $region27: #{tpu_custom_call.1} parent=1 // pred_check_branch
      %47 = sbr.rel (%p45) target = $region29
    $region28: #{tpu_custom_call.1} parent=1 // pred_region
      %48 = vst [vmem:[#allocation2] sm:$0xff] 0.0
    $region29: #{tpu_custom_call.1} parent=1 // pred_fallthru
      _
    %v49 = vld [vmem:[#allocation2] sm:$0xff]
    %v50 = vld [vmem:[#allocation3] sm:$0xff]
    %v51 = vld [vmem:[#allocation6] sm:$0xff]
    %v52 = vld [vmem:[#allocation6 + $0x8] sm:$0xff]
    %v53 = vld [vmem:[#allocation6 + $0x10] sm:$0xff]
    %v54 = vld [vmem:[#allocation6 + $0x18] sm:$0xff]
    %v55 = vld [vmem:[#allocation6 + $0x20] sm:$0xff]
    %v56 = vld [vmem:[#allocation6 + $0x28] sm:$0xff]
    %v57 = vld [vmem:[#allocation6 + $0x30] sm:$0xff]
    %v58 = vld [vmem:[#allocation6 + $0x38] sm:$0xff]
    %v59 = vld [vmem:[#allocation6 + $0x40] sm:$0xff]
    %v60 = vld [vmem:[#allocation6 + $0x48] sm:$0xff]
    %v61 = vld [vmem:[#allocation6 + $0x50] sm:$0xff]
    %v62 = vld [vmem:[#allocation6 + $0x58] sm:$0xff]
    %v63 = vld [vmem:[#allocation6 + $0x60] sm:$0xff]
    %v64 = vld [vmem:[#allocation6 + $0x68] sm:$0xff]
    %v65 = vld [vmem:[#allocation6 + $0x70] sm:$0xff]
    %v66 = vld [vmem:[#allocation6 + $0x78] sm:$0xff]
    %67 = vmatprep.subr.mxu0 0.0
    %68 = vmatpush1.msra.mxu0 %v66
    %69 = vmatprep.subr.mxu0 0.0
    %70 = vmatpush1.msra.mxu0 %v65
    %71 = vmatprep.subr.mxu0 0.0
    %72 = vmatpush1.msra.mxu0 %v64
    %73 = vmatprep.subr.mxu0 0.0
    %74 = vmatpush1.msra.mxu0 %v63
    %75 = vmatprep.subr.mxu0 0.0
    %76 = vmatpush1.msra.mxu0 %v62
    %77 = vmatprep.subr.mxu0 0.0
    %78 = vmatpush1.msra.mxu0 %v61
    %79 = vmatprep.subr.mxu0 0.0
    %80 = vmatpush1.msra.mxu0 %v60
    %81 = vmatprep.subr.mxu0 0.0
    %82 = vmatpush1.msra.mxu0 %v59
    %83 = vmatprep.subr.mxu0 0.0
    %84 = vmatpush1.msra.mxu0 %v58
    %85 = vmatprep.subr.mxu0 0.0
    %86 = vmatpush1.msra.mxu0 %v57
    %87 = vmatprep.subr.mxu0 0.0
    %88 = vmatpush1.msra.mxu0 %v56
    %89 = vmatprep.subr.mxu0 0.0
    %90 = vmatpush1.msra.mxu0 %v55
    %91 = vmatprep.subr.mxu0 0.0
    %92 = vmatpush1.msra.mxu0 %v54
    %93 = vmatprep.subr.mxu0 0.0
    %94 = vmatpush1.msra.mxu0 %v53
    %95 = vmatprep.subr.mxu0 0.0
    %96 = vmatpush1.msra.mxu0 %v52
    %97 = vmatprep.subr.mxu0 0.0
    %98 = vmatpush1.msra.mxu0 %v51
    %99 = vmatprep.subr.mxu0 0.0
    %100 = vmatpush2.msra.mxu0 0.0
    %101 = vmatprep.subr.mxu0 0.0
    %102 = vmatpush2.msra.mxu0 0.0
    %103 = vmatprep.subr.mxu0 0.0
    %104 = vmatpush2.msra.mxu0 0.0
    %105 = vmatprep.subr.mxu0 0.0
    %106 = vmatpush2.msra.mxu0 0.0
    %107 = vmatprep.subr.mxu0 0.0
    %108 = vmatpush2.msra.mxu0 0.0
    %109 = vmatprep.subr.mxu0 0.0
    %110 = vmatpush2.msra.mxu0 0.0
    %111 = vmatprep.subr.mxu0 0.0
    %112 = vmatpush2.msra.mxu0 0.0
    %113 = vmatprep.subr.mxu0 0.0
    %114 = vmatpush2.msra.mxu0 0.0
    %115 = vmatprep.subr.mxu0 0.0
    %116 = vmatpush2.msra.mxu0 0.0
    %117 = vmatprep.subr.mxu0 0.0
    %118 = vmatpush2.msra.mxu0 0.0
    %119 = vmatprep.subr.mxu0 0.0
    %120 = vmatpush2.msra.mxu0 0.0
    %121 = vmatprep.subr.mxu0 0.0
    %122 = vmatpush2.msra.mxu0 0.0
    %123 = vmatprep.subr.mxu0 0.0
    %124 = vmatpush2.msra.mxu0 0.0
    %125 = vmatprep.subr.mxu0 0.0
    %126 = vmatpush2.msra.mxu0 0.0
    %127 = vmatprep.subr.mxu0 0.0
    %128 = vmatpush2.msra.mxu0 0.0
    %129 = vmatprep.subr.mxu0 0.0
    %130 = vmatpush2.msra.mxu0 0.0
    %131 = vmatprep.mubr.f32.mxu0 0.0
    %132 = vmatmul.mubr.f32.gmra.mxu0 %v50
    %v133 = vpop.f32.mrf.mxu0
    %v134 = vadd.f32 0.0, %v133
    %v135 = vpop.f32.mrf.mxu0
    %136 = vdwg.mxu0
    %v137 = vadd.f32 %v49, %v134
    %138 = vst [vmem:[#allocation2] sm:$0xff] %v137
    // Predicated region
    $region30: #{tpu_custom_call.1} parent=1 // pred_check
      %p139 = pneg %p44
    $region31: #{tpu_custom_call.1} parent=1 // pred_check_branch
      %141 = sbr.rel (%p139) target = $region33
    $region32: #{tpu_custom_call.1} parent=1 // pred_region
      %v142 = vld [vmem:[#allocation2] sm:$0xff]
      %v143 = vld [vmem:[%s2] sm:$0x1]
      %v145 = vlaneseq
      %v146 = vshrl.u32 %v145, 7
      %v147 = vsub.s32 0, %v146
      %v148 = vrot.slane %v143, %v147
      %v150 = vmul.f32 %v142, %v148
      %v151 = vld [vmem:[%s3] sm:$0x1]
      %v153 = vlaneseq
      %v154 = vshrl.u32 %v153, 7
      %v155 = vsub.s32 0, %v154
      %v156 = vrot.slane %v151, %v155
      %v158 = vadd.f32 %v150, %v156
      %v159 = vmax.f32 %v158, 0.0
      %160 = vst [vmem:[#allocation8] sm:$0xff] %v159
    $region33: #{tpu_custom_call.1} parent=1 // pred_fallthru
      _
    // Predicated region
    $region34: #{tpu_custom_call.1} parent=1 // pred_check
      _
    $region35: #{tpu_custom_call.1} parent=1 // pred_check_branch
      %162 = sbr.rel (0) target = $region37
    $region36: #{tpu_custom_call.1} parent=1 // pred_region
      %s164 = ssub.s32 128, 128
      %165 = vsyncadd [#allocation5], %s164
      %s167 = sshll.u32 [#allocation8], 4
      %s168 = int_to_ptr.vmem [resolvable:$true] %s167
      %170 = dma.vmem_to_hbm [thread:$0]  %s168, 128, %s4, [#allocation5]
    $region37: #{tpu_custom_call.1} parent=1 // pred_fallthru
      _
    // Predicated region
    $region38: #{tpu_custom_call.1} parent=1 // pred_check
      _
    $region39: #{tpu_custom_call.1} parent=1 // pred_check_branch
      %172 = sbr.rel (0) target = $region41
    $region40: #{tpu_custom_call.1} parent=1 // pred_region
      %173 = dma.done [#allocation5], 128
    $region41: #{tpu_custom_call.1} parent=1 // pred_fallthru
      _
    %174 = vsyncpa [#allocation4], 1
    %175 = vsyncpa [#allocation7], 1
    %176 = vsyncpa [#allocation5], 1

</llo_original>
